<compile_context>
chip_gen: v7x
topology: tpu7x:2x2x1
jax: 0.10.0
libtpu: 0.0.40
codegen_flags: <defaults>
</compile_context>

<pallas_src>
import functools

import jax
import jax.numpy as jnp
from jax.experimental import pallas as pl
from jax.experimental.pallas import tpu as pltpu

LANE = 128          # TPU lane width (last dim of a vreg)
MAX_TB = 4096       # biggest single batch tile; keeps well inside v5e's 16 MiB scoped VMEM


def _round_up(n, m):
    return ((n + m - 1) // m) * m


def _cdiv(a, b):
    return (a + b - 1) // b


def _num_batch_tiles():
    """2 batch tiles on v7x (2 TensorCores/chip); otherwise 1 (grid is a serial loop)."""
    try:
        kind = jax.devices()[0].device_kind.lower()
    except Exception:
        return 1
    return 2 if "v7" in kind else 1


def dqn_kernel(x_ref, w1_ref, b1_ref, w2_ref, b2_ref, o_ref):
    # hidden = relu(x @ W1 + b1): f32 MXU accumulation, f32 VPU elementwise.
    h = jnp.dot(x_ref[...], w1_ref[...], preferred_element_type=jnp.float32)
    h = jnp.maximum(h + b1_ref[...], 0.0)          # b1 is (1, Hp) -> broadcast over batch
    # out = hidden @ W2 + b2: bf16 MXU operands, f32 accumulation, lane-dense store.
    o = jnp.dot(h.astype(jnp.bfloat16), w2_ref[...], preferred_element_type=jnp.float32)
    o_ref[...] = (o + b2_ref[...]).astype(o_ref.dtype)


def prepare_params(w1, b1, w2, b2):
    """One-time padding / casting of the DQN parameters into kernel layout.

    Call once after init (or after each optimizer step) — NOT per forward call — so the
    per-call graph contains no HBM->HBM pad ops.

    w1: [obs, H], b1: [H] or [1, H], w2: [H, A], b2: [A] or [1, A].
    Returns (w1p [obs, Hp] f32, b1p [1, Hp] f32, w2p [Hp, Ap] bf16, b2p [1, Ap] f32).
    Zero padding is mathematically inert (padded hidden lanes come out 0 after ReLU,
    padded output lanes are sliced away by the wrapper).
    """
    obs, H = w1.shape
    A = w2.shape[1]
    h_p = _round_up(H, LANE)          # 164 -> 256 (lane-dense hidden)
    a_p = _round_up(A, LANE)          # 2   -> 128 (lane-dense output)
    w1p = jnp.zeros((obs, h_p), jnp.float32).at[:, :H].set(w1.astype(jnp.float32))
    b1p = jnp.zeros((1, h_p), jnp.float32).at[:, :H].set(
        b1.reshape(1, H).astype(jnp.float32))
    w2p = jnp.zeros((h_p, a_p), jnp.float32).at[:H, :A].set(
        w2.astype(jnp.float32)).astype(jnp.bfloat16)
    b2p = jnp.zeros((1, a_p), jnp.float32).at[:, :A].set(
        b2.reshape(1, A).astype(jnp.float32))
    return w1p, b1p, w2p, b2p


@functools.partial(jax.jit, static_argnames=("act_dim", "tb"))
def dqn_forward(x, w1p, b1p, w2p, b2p, *, act_dim, tb=None):
    """x: [B, obs] f32; params from prepare_params().  Returns [B, act_dim] f32."""
    B, obs = x.shape
    h_p = w1p.shape[1]
    a_p = w2p.shape[1]
    x = x.astype(jnp.float32)

    if tb is None:
        # One grid step on v5e/v6e (single TC -> grid is a serial loop); two parallel
        # steps on v7x so both TensorCores get work.  Cap so the double-buffered
        # (tb, 128) f32 output tile stays far below the default scoped-VMEM limit.
        tb = min(_round_up(_cdiv(B, _num_batch_tiles()), 8), MAX_TB)
    b_p = _round_up(B, tb)
    if b_p != B:   # only pads when B is not a tile multiple
        x = jnp.zeros((b_p, obs), x.dtype).at[:B, :].set(x)

    grid = (b_p // tb,)
    flops = 2 * b_p * (obs * h_p + h_p * a_p)
    bytes_accessed = (b_p * obs * 4 + w1p.size * 4 + b1p.size * 4
                      + w2p.size * 2 + b2p.size * 4 + b_p * a_p * 4)

    out_padded = pl.pallas_call(
        dqn_kernel,
        out_shape=jax.ShapeDtypeStruct((b_p, a_p), jnp.float32),
        grid_spec=pltpu.PrefetchScalarGridSpec(
            num_scalar_prefetch=0,
            grid=grid,
            in_specs=[
                # Activations: tiled along batch; feature dim left unpadded (full dim).
                pl.BlockSpec((tb, obs), lambda i: (i, 0)),
                # Weights / biases: constant index_map -> fetched once, stay
                # VMEM-resident across all batch tiles.
                pl.BlockSpec((obs, h_p), lambda i: (0, 0)),
                pl.BlockSpec((1, h_p), lambda i: (0, 0)),
                pl.BlockSpec((h_p, a_p), lambda i: (0, 0)),
                pl.BlockSpec((1, a_p), lambda i: (0, 0)),
            ],
            out_specs=pl.BlockSpec((tb, a_p), lambda i: (i, 0)),
        ),
        compiler_params=pltpu.CompilerParams(
            # Batch tiles are independent -> shard across TensorCores on v7x megacore.
            dimension_semantics=("parallel",),
        ),
        cost_estimate=pl.CostEstimate(
            flops=flops, transcendentals=0, bytes_accessed=bytes_accessed),
    )(x, w1p, b1p, w2p, b2p)

    # Padded output lanes are zeros; slice the real Q-values back out.
    # TODO(synk): for very large replay batches on v5e, fuse the argmax over the A=2
    # lanes (or emit a [A_pad, B] layout) to cut the 64x-padded output writeback.
    return out_padded[:B, :act_dim]


def init_params(key, obs_dim, act_dim, hidden=164):
    """Deterministic init mimicking nn.Linear default (U[-1/sqrt(fan_in), +1/sqrt(fan_in)])."""
    k1, k2, k3, k4 = jax.random.split(key, 4)
    bound1 = 1.0 / jnp.sqrt(obs_dim)
    bound2 = 1.0 / jnp.sqrt(hidden)
    w1 = jax.random.uniform(k1, (obs_dim, hidden), jnp.float32, -bound1, bound1)
    b1 = jax.random.uniform(k2, (1, hidden), jnp.float32, -bound1, bound1)
    w2 = jax.random.uniform(k3, (hidden, act_dim), jnp.float32, -bound2, bound2)
    b2 = jax.random.uniform(k4, (1, act_dim), jnp.float32, -bound2, bound2)
    return w1, b1, w2, b2


if __name__ == "__main__":
    obs_dim = 4      # CartPole observation_space
    act_dim = 2      # CartPole action_space
    hidden = 164
    batch = 512      # replay-batch sized call

    key = jax.random.PRNGKey(0)
    kx, kp = jax.random.split(key)
    x = jax.random.normal(kx, (batch, obs_dim), dtype=jnp.float32)
    w1, b1, w2, b2 = init_params(kp, obs_dim, act_dim, hidden)

    # One-time parameter prep (padding + bf16 cast of w2); per-call graph touches only x.
    w1p, b1p, w2p, b2p = prepare_params(w1, b1, w2, b2)

    out = dqn_forward(x, w1p, b1p, w2p, b2p, act_dim=act_dim)
    out = jax.block_until_ready(out)

    # Pure-JAX reference mimicking the kernel's dtype path:
    # layer 1 in f32, layer 2 with bf16 operands and f32 accumulation.
    h_ref = jnp.maximum(x @ w1 + b1, 0.0)
    ref = (h_ref.astype(jnp.bfloat16).astype(jnp.float32)
           @ w2.astype(jnp.bfloat16).astype(jnp.float32) + b2)
    assert out.shape == (batch, act_dim)
    err = float(jnp.max(jnp.abs(out - ref)))
    assert jnp.allclose(out, ref, atol=5e-3, rtol=5e-3), err

    print("KERNEL_OK")
</pallas_src>

<mosaic_0001>
module attributes {stable_mosaic.version = 11 : i64} {
  func.func @dqn_kernel(%arg0: i32, %arg1: memref<512x4xf32, #tpu.memory_space<vmem>>, %arg2: memref<4x256xf32, #tpu.memory_space<vmem>>, %arg3: memref<1x256xf32, #tpu.memory_space<vmem>>, %arg4: memref<256x128xbf16, #tpu.memory_space<vmem>>, %arg5: memref<1x128xf32, #tpu.memory_space<vmem>>, %arg6: memref<512x128xf32, #tpu.memory_space<vmem>>) attributes {dimension_semantics = [#tpu.dimension_semantics<parallel>], iteration_bounds = array<i64: 1>, scalar_prefetch = 0 : i64, scratch_operands = 0 : i64, tpu.core_type = #tpu.core_type<tc>, window_params = [{transform_indices = @transform_0, window_bounds = array<i64: 512, 4>}, {pipeline_mode = #tpu.pipeline_mode<synchronous>, transform_indices = @transform_1, window_bounds = array<i64: 4, 256>}, {pipeline_mode = #tpu.pipeline_mode<synchronous>, transform_indices = @transform_2, window_bounds = array<i64: 1, 256>}, {pipeline_mode = #tpu.pipeline_mode<synchronous>, transform_indices = @transform_3, window_bounds = array<i64: 256, 128>}, {pipeline_mode = #tpu.pipeline_mode<synchronous>, transform_indices = @transform_4, window_bounds = array<i64: 1, 128>}, {transform_indices = @transform_5, window_bounds = array<i64: 512, 128>}]} {
    %c0 = arith.constant 0 : index
    %c0_0 = arith.constant 0 : index
    %0 = vector.load %arg1[%c0, %c0_0] : memref<512x4xf32, #tpu.memory_space<vmem>>, vector<512x4xf32>
    %c0_1 = arith.constant 0 : index
    %c0_2 = arith.constant 0 : index
    %1 = vector.load %arg2[%c0_1, %c0_2] : memref<4x256xf32, #tpu.memory_space<vmem>>, vector<4x256xf32>
    %cst = arith.constant dense<0.000000e+00> : vector<512x256xf32>
    %2 = tpu.matmul %0, %1, %cst {dimension_numbers = #tpu.dot_dimension_numbers<[1], [0], [0], [1], [0, 0, 1, 1], [], []>} : vector<512x4xf32>, vector<4x256xf32>, vector<512x256xf32> -> vector<512x256xf32>
    %c0_3 = arith.constant 0 : index
    %c0_4 = arith.constant 0 : index
    %3 = vector.load %arg3[%c0_3, %c0_4] : memref<1x256xf32, #tpu.memory_space<vmem>>, vector<1x256xf32>
    %4 = vector.broadcast %3 : vector<1x256xf32> to vector<512x256xf32>
    %5 = arith.addf %2, %4 : vector<512x256xf32>
    %cst_5 = arith.constant 0.000000e+00 : f32
    %6 = vector.broadcast %cst_5 : f32 to vector<512x256xf32>
    %7 = arith.maximumf %5, %6 : vector<512x256xf32>
    %8 = arith.truncf %7 : vector<512x256xf32> to vector<512x256xbf16>
    %c0_6 = arith.constant 0 : index
    %c0_7 = arith.constant 0 : index
    %9 = vector.load %arg4[%c0_6, %c0_7] : memref<256x128xbf16, #tpu.memory_space<vmem>>, vector<256x128xbf16>
    %cst_8 = arith.constant dense<0.000000e+00> : vector<512x128xf32>
    %10 = tpu.matmul %8, %9, %cst_8 {dimension_numbers = #tpu.dot_dimension_numbers<[1], [0], [0], [1], [0, 0, 1, 1], [], []>} : vector<512x256xbf16>, vector<256x128xbf16>, vector<512x128xf32> -> vector<512x128xf32>
    %c0_9 = arith.constant 0 : index
    %c0_10 = arith.constant 0 : index
    %11 = vector.load %arg5[%c0_9, %c0_10] : memref<1x128xf32, #tpu.memory_space<vmem>>, vector<1x128xf32>
    %12 = vector.broadcast %11 : vector<1x128xf32> to vector<512x128xf32>
    %13 = arith.addf %10, %12 : vector<512x128xf32>
    %c0_11 = arith.constant 0 : index
    %c0_12 = arith.constant 0 : index
    %14 = vector.load %arg6[%c0_11, %c0_12] : memref<512x128xf32, #tpu.memory_space<vmem>>, vector<512x128xf32>
    tpu.vector_store %arg6[%c0_11, %c0_12], %13 {strides = array<i32>} : memref<512x128xf32, #tpu.memory_space<vmem>>, vector<512x128xf32>,
    return
  }
  func.func @transform_0(%arg0: i32) -> (i32, i32) {
    %c0_i32 = arith.constant 0 : i32
    %c0_i32_0 = arith.constant 0 : i32
    return %arg0, %c0_i32 : i32, i32
  }
  func.func @transform_1(%arg0: i32) -> (i32, i32) {
    %c0_i32 = arith.constant 0 : i32
    %c0_i32_0 = arith.constant 0 : i32
    %c0_i32_1 = arith.constant 0 : i32
    return %c0_i32, %c0_i32_0 : i32, i32
  }
  func.func @transform_2(%arg0: i32) -> (i32, i32) {
    %c0_i32 = arith.constant 0 : i32
    %c0_i32_0 = arith.constant 0 : i32
    %c0_i32_1 = arith.constant 0 : i32
    return %c0_i32, %c0_i32_0 : i32, i32
  }
  func.func @transform_3(%arg0: i32) -> (i32, i32) {
    %c0_i32 = arith.constant 0 : i32
    %c0_i32_0 = arith.constant 0 : i32
    %c0_i32_1 = arith.constant 0 : i32
    return %c0_i32, %c0_i32_0 : i32, i32
  }
  func.func @transform_4(%arg0: i32) -> (i32, i32) {
    %c0_i32 = arith.constant 0 : i32
    %c0_i32_0 = arith.constant 0 : i32
    %c0_i32_1 = arith.constant 0 : i32
    return %c0_i32, %c0_i32_0 : i32, i32
  }
  func.func @transform_5(%arg0: i32) -> (i32, i32) {
    %c0_i32 = arith.constant 0 : i32
    %c0_i32_0 = arith.constant 0 : i32
    return %arg0, %c0_i32 : i32, i32
  }
}

</mosaic_0001>

<llo_original>
// kernel: dqn_forward.1
$region0: #{dqn_forward.1}
  #allocation0 [shape = 'u32[]', space=smem, size = 0x4, offset = 0x4, fixed_abs, tag = 'smem constant byte address 0x4 - core index']
  #allocation1 [shape = 'u32[144,128]{1,0:T(1,128)}', space=vmem, size = 0x12000, scoped, tag = 'internal scratch']
  %s0 = inlined_call_operand.vmem [shape: f32[512,4], index: 0, kind: input, shape index: {}]
  %s1 = inlined_call_operand.vmem [shape: f32[4,256], index: 1, kind: input, shape index: {}]
  %s2 = inlined_call_operand.vmem [shape: f32[1,256], index: 2, kind: input, shape index: {}]
  %s3 = inlined_call_operand.vmem [shape: bf16[256,128], index: 3, kind: input, shape index: {}]
  %s4 = inlined_call_operand.vmem [shape: f32[1,128], index: 4, kind: input, shape index: {}]
  %s5 = inlined_call_operand.vmem [shape: f32[512,128], index: 5, kind: output, shape index: {}]
  %s6 = sld [smem:[#allocation0]]
  $region30: #{dqn_forward.1} parent=0
    _
  %s8 = ssub.s32 1, %s6
  %s9 = scalar_select 0, %s8, %s6
  // Predicated region
  $region2: #{dqn_forward.1} parent=0 // pred_check
    _
  $region3: #{dqn_forward.1} parent=0 // pred_check_branch
    %11 = sbr.rel (0) target = $region5
  $region4: #{dqn_forward.1} parent=0 // pred_region
    _
  $region5: #{dqn_forward.1} parent=0 // pred_fallthru
    _
  // Predicated region
  $region6: #{dqn_forward.1} parent=0 // pred_check
    _
  $region7: #{dqn_forward.1} parent=0 // pred_check_branch
    %13 = sbr.rel (0) target = $region9
  $region8: #{dqn_forward.1} parent=0 // pred_region
    _
  $region9: #{dqn_forward.1} parent=0 // pred_fallthru
    _
  // Predicated region
  $region10: #{dqn_forward.1} parent=0 // pred_check
    _
  $region11: #{dqn_forward.1} parent=0 // pred_check_branch
    %15 = sbr.rel (0) target = $region13
  $region12: #{dqn_forward.1} parent=0 // pred_region
    _
  $region13: #{dqn_forward.1} parent=0 // pred_fallthru
    _
  // Predicated region
  $region14: #{dqn_forward.1} parent=0 // pred_check
    _
  $region15: #{dqn_forward.1} parent=0 // pred_check_branch
    %17 = sbr.rel (0) target = $region17
  $region16: #{dqn_forward.1} parent=0 // pred_region
    _
  $region17: #{dqn_forward.1} parent=0 // pred_fallthru
    _
  // Predicated region
  $region18: #{dqn_forward.1} parent=0 // pred_check
    _
  $region19: #{dqn_forward.1} parent=0 // pred_check_branch
    %19 = sbr.rel (0) target = $region21
  $region20: #{dqn_forward.1} parent=0 // pred_region
    _
  $region21: #{dqn_forward.1} parent=0 // pred_fallthru
    _
  %v21 = vld [vmem:[%s0] sm:$0xff]
  %v22 = vld [vmem:[%s0 + $0x8] sm:$0xff]
  %v23 = vld [vmem:[%s0 + $0x10] sm:$0xff]
  %v24 = vld [vmem:[%s0 + $0x18] sm:$0xff]
  %v25 = vld [vmem:[%s0 + $0x20] sm:$0xff]
  %v26 = vld [vmem:[%s0 + $0x28] sm:$0xff]
  %v27 = vld [vmem:[%s0 + $0x30] sm:$0xff]
  %v28 = vld [vmem:[%s0 + $0x38] sm:$0xff]
  %v29 = vld [vmem:[%s0 + $0x40] sm:$0xff]
  %v30 = vld [vmem:[%s0 + $0x48] sm:$0xff]
  %v31 = vld [vmem:[%s0 + $0x50] sm:$0xff]
  %v32 = vld [vmem:[%s0 + $0x58] sm:$0xff]
  %v33 = vld [vmem:[%s0 + $0x60] sm:$0xff]
  %v34 = vld [vmem:[%s0 + $0x68] sm:$0xff]
  %v35 = vld [vmem:[%s0 + $0x70] sm:$0xff]
  %v36 = vld [vmem:[%s0 + $0x78] sm:$0xff]
  %v37 = vld [vmem:[%s0 + $0x80] sm:$0xff]
  %v38 = vld [vmem:[%s0 + $0x88] sm:$0xff]
  %v39 = vld [vmem:[%s0 + $0x90] sm:$0xff]
  %v40 = vld [vmem:[%s0 + $0x98] sm:$0xff]
  %v41 = vld [vmem:[%s0 + $0xa0] sm:$0xff]
  %v42 = vld [vmem:[%s0 + $0xa8] sm:$0xff]
  %v43 = vld [vmem:[%s0 + $0xb0] sm:$0xff]
  %v44 = vld [vmem:[%s0 + $0xb8] sm:$0xff]
  %v45 = vld [vmem:[%s0 + $0xc0] sm:$0xff]
  %v46 = vld [vmem:[%s0 + $0xc8] sm:$0xff]
  %v47 = vld [vmem:[%s0 + $0xd0] sm:$0xff]
  %v48 = vld [vmem:[%s0 + $0xd8] sm:$0xff]
  %v49 = vld [vmem:[%s0 + $0xe0] sm:$0xff]
  %v50 = vld [vmem:[%s0 + $0xe8] sm:$0xff]
  %v51 = vld [vmem:[%s0 + $0xf0] sm:$0xff]
  %v52 = vld [vmem:[%s0 + $0xf8] sm:$0xff]
  %v53 = vld [vmem:[%s0 + $0x100] sm:$0xff]
  %v54 = vld [vmem:[%s0 + $0x108] sm:$0xff]
  %v55 = vld [vmem:[%s0 + $0x110] sm:$0xff]
  %v56 = vld [vmem:[%s0 + $0x118] sm:$0xff]
  %v57 = vld [vmem:[%s0 + $0x120] sm:$0xff]
  %v58 = vld [vmem:[%s0 + $0x128] sm:$0xff]
  %v59 = vld [vmem:[%s0 + $0x130] sm:$0xff]
  %v60 = vld [vmem:[%s0 + $0x138] sm:$0xff]
  %v61 = vld [vmem:[%s0 + $0x140] sm:$0xff]
  %v62 = vld [vmem:[%s0 + $0x148] sm:$0xff]
  %v63 = vld [vmem:[%s0 + $0x150] sm:$0xff]
  %v64 = vld [vmem:[%s0 + $0x158] sm:$0xff]
  %v65 = vld [vmem:[%s0 + $0x160] sm:$0xff]
  %v66 = vld [vmem:[%s0 + $0x168] sm:$0xff]
  %v67 = vld [vmem:[%s0 + $0x170] sm:$0xff]
  %v68 = vld [vmem:[%s0 + $0x178] sm:$0xff]
  %v69 = vld [vmem:[%s0 + $0x180] sm:$0xff]
  %v70 = vld [vmem:[%s0 + $0x188] sm:$0xff]
  %v71 = vld [vmem:[%s0 + $0x190] sm:$0xff]
  %v72 = vld [vmem:[%s0 + $0x198] sm:$0xff]
  %v73 = vld [vmem:[%s0 + $0x1a0] sm:$0xff]
  %v74 = vld [vmem:[%s0 + $0x1a8] sm:$0xff]
  %v75 = vld [vmem:[%s0 + $0x1b0] sm:$0xff]
  %v76 = vld [vmem:[%s0 + $0x1b8] sm:$0xff]
  %v77 = vld [vmem:[%s0 + $0x1c0] sm:$0xff]
  %v78 = vld [vmem:[%s0 + $0x1c8] sm:$0xff]
  %v79 = vld [vmem:[%s0 + $0x1d0] sm:$0xff]
  %v80 = vld [vmem:[%s0 + $0x1d8] sm:$0xff]
  %v81 = vld [vmem:[%s0 + $0x1e0] sm:$0xff]
  %v82 = vld [vmem:[%s0 + $0x1e8] sm:$0xff]
  %v83 = vld [vmem:[%s0 + $0x1f0] sm:$0xff]
  %v84 = vld [vmem:[%s0 + $0x1f8] sm:$0xff]
  %v85 = vld [vmem:[%s1] sm:$0xff]
  %v86 = vld [vmem:[%s2] sm:$0x3]
  %v88 = vlaneseq
  %v89 = vshrl.u32 %v88, 7
  %v90 = vsub.s32 0, %v89
  %v91 = vrot.slane %v86, %v90
  %v92 = vlaneseq
  %v93 = vshrl.u32 %v92, 7
  %v94 = vsub.s32 1, %v93
  %v95 = vrot.slane %v86, %v94
  %v99 = vcombine.high %v85, %v85
  %vm100 = vcmask 31744
  %v102 = vsel %vm100, %v21, 0
  %v105 = vsel %vm100, %v22, 0
  %v108 = vsel %vm100, %v23, 0
  %v111 = vsel %vm100, %v24, 0
  %v114 = vsel %vm100, %v25, 0
  %v117 = vsel %vm100, %v26, 0
  %v120 = vsel %vm100, %v27, 0
  %v123 = vsel %vm100, %v28, 0
  %v126 = vsel %vm100, %v29, 0
  %v129 = vsel %vm100, %v30, 0
  %v132 = vsel %vm100, %v31, 0
  %v135 = vsel %vm100, %v32, 0
  %v138 = vsel %vm100, %v33, 0
  %v141 = vsel %vm100, %v34, 0
  %v144 = vsel %vm100, %v35, 0
  %v147 = vsel %vm100, %v36, 0
  %v150 = vsel %vm100, %v37, 0
  %v153 = vsel %vm100, %v38, 0
  %v156 = vsel %vm100, %v39, 0
  %v159 = vsel %vm100, %v40, 0
  %v162 = vsel %vm100, %v41, 0
  %v165 = vsel %vm100, %v42, 0
  %v168 = vsel %vm100, %v43, 0
  %v171 = vsel %vm100, %v44, 0
  %v174 = vsel %vm100, %v45, 0
  %v177 = vsel %vm100, %v46, 0
  %v180 = vsel %vm100, %v47, 0
  %v183 = vsel %vm100, %v48, 0
  %v186 = vsel %vm100, %v49, 0
  %v189 = vsel %vm100, %v50, 0
  %v192 = vsel %vm100, %v51, 0
  %v195 = vsel %vm100, %v52, 0
  %v198 = vsel %vm100, %v53, 0
  %v201 = vsel %vm100, %v54, 0
  %v204 = vsel %vm100, %v55, 0
  %v207 = vsel %vm100, %v56, 0
  %v210 = vsel %vm100, %v57, 0
  %v213 = vsel %vm100, %v58, 0
  %v216 = vsel %vm100, %v59, 0
  %v219 = vsel %vm100, %v60, 0
  %v222 = vsel %vm100, %v61, 0
  %v225 = vsel %vm100, %v62, 0
  %v228 = vsel %vm100, %v63, 0
  %v231 = vsel %vm100, %v64, 0
  %v234 = vsel %vm100, %v65, 0
  %v237 = vsel %vm100, %v66, 0
  %v240 = vsel %vm100, %v67, 0
  %v243 = vsel %vm100, %v68, 0
  %v246 = vsel %vm100, %v69, 0
  %v249 = vsel %vm100, %v70, 0
  %v252 = vsel %vm100, %v71, 0
  %v255 = vsel %vm100, %v72, 0
  %v258 = vsel %vm100, %v73, 0
  %v261 = vsel %vm100, %v74, 0
  %v264 = vsel %vm100, %v75, 0
  %v267 = vsel %vm100, %v76, 0
  %v270 = vsel %vm100, %v77, 0
  %v273 = vsel %vm100, %v78, 0
  %v276 = vsel %vm100, %v79, 0
  %v279 = vsel %vm100, %v80, 0
  %v282 = vsel %vm100, %v81, 0
  %v285 = vsel %vm100, %v82, 0
  %v288 = vsel %vm100, %v83, 0
  %v291 = vsel %vm100, %v84, 0
  %vm293 = vcmask 1043456
  %v294 = vsel %vm293, %v85, 0
  %v296 = vsel %vm293, %v99, 0
  %298 = vmatprep.subr.mxu0 %v296
  %299 = vmatpush1.msra.mxu0 %v294
  %300 = vmatprep.subr.mxu0 0.0
  %301 = vmatpush1.msra.mxu0 0.0
  %302 = vmatprep.subr.mxu0 0.0
  %303 = vmatpush1.msra.mxu0 0.0
  %304 = vmatprep.subr.mxu0 0.0
  %305 = vmatpush1.msra.mxu0 0.0
  %306 = vmatprep.subr.mxu0 0.0
  %307 = vmatpush1.msra.mxu0 0.0
  %308 = vmatprep.subr.mxu0 0.0
  %309 = vmatpush1.msra.mxu0 0.0
  %310 = vmatprep.subr.mxu0 0.0
  %311 = vmatpush1.msra.mxu0 0.0
  %312 = vmatprep.subr.mxu0 0.0
  %313 = vmatpush1.msra.mxu0 0.0
  %314 = vmatprep.subr.mxu0 0.0
  %315 = vmatpush1.msra.mxu0 0.0
  %316 = vmatprep.subr.mxu0 0.0
  %317 = vmatpush1.msra.mxu0 0.0
  %318 = vmatprep.subr.mxu0 0.0
  %319 = vmatpush1.msra.mxu0 0.0
  %320 = vmatprep.subr.mxu0 0.0
  %321 = vmatpush1.msra.mxu0 0.0
  %322 = vmatprep.subr.mxu0 0.0
  %323 = vmatpush1.msra.mxu0 0.0
  %324 = vmatprep.subr.mxu0 0.0
  %325 = vmatpush1.msra.mxu0 0.0
  %326 = vmatprep.subr.mxu0 0.0
  %327 = vmatpush1.msra.mxu0 0.0
  %328 = vmatprep.subr.mxu0 0.0
  %329 = vmatpush1.msra.mxu0 0.0
  %330 = vmatprep.subr.mxu0 0.0
  %331 = vmatpush1.msra.mxu0 0.0
  %332 = vmatprep.subr.mxu0 0.0
  %333 = vmatpush1.msra.mxu0 0.0
  %334 = vmatprep.subr.mxu0 0.0
  %335 = vmatpush1.msra.mxu0 0.0
  %336 = vmatprep.subr.mxu0 0.0
  %337 = vmatpush1.msra.mxu0 0.0
  %338 = vmatprep.subr.mxu0 0.0
  %339 = vmatpush1.msra.mxu0 0.0
  %340 = vmatprep.subr.mxu0 0.0
  %341 = vmatpush1.msra.mxu0 0.0
  %342 = vmatprep.subr.mxu0 0.0
  %343 = vmatpush1.msra.mxu0 0.0
  %344 = vmatprep.subr.mxu0 0.0
  %345 = vmatpush1.msra.mxu0 0.0
  %346 = vmatprep.subr.mxu0 0.0
  %347 = vmatpush1.msra.mxu0 0.0
  %348 = vmatprep.subr.mxu0 0.0
  %349 = vmatpush1.msra.mxu0 0.0
  %350 = vmatprep.subr.mxu0 0.0
  %351 = vmatpush1.msra.mxu0 0.0
  %352 = vmatprep.subr.mxu0 0.0
  %353 = vmatpush1.msra.mxu0 0.0
  %354 = vmatprep.subr.mxu0 0.0
  %355 = vmatpush1.msra.mxu0 0.0
  %356 = vmatprep.subr.mxu0 0.0
  %357 = vmatpush1.msra.mxu0 0.0
  %358 = vmatprep.subr.mxu0 0.0
  %359 = vmatpush1.msra.mxu0 0.0
  %360 = vmatprep.subr.mxu0 0.0
  %361 = vmatpush1.msra.mxu0 0.0
  %362 = vmatprep.mubr.f32.mxu0 0.0
  %363 = vmatmul.mubr.f32.gmra.mrb[0].mxu0 %v102
  %v364 = vpop.f32.mrb[0].mxu0
  %v365 = vadd.f32 %v91, %v364
  %v366 = vpop.f32.mrb[0].mxu0
  %v367 = vadd.f32 %v95, %v366
  %368 = vmatprep.mubr.f32.mxu0 0.0
  %369 = vmatmul.mubr.f32.gmra.mrb[0].mxu0 %v105
  %v370 = vpop.f32.mrb[0].mxu0
  %v371 = vadd.f32 %v91, %v370
  %v372 = vpop.f32.mrb[0].mxu0
  %v373 = vadd.f32 %v95, %v372
  %374 = vmatprep.mubr.f32.mxu0 0.0
  %375 = vmatmul.mubr.f32.gmra.mrb[0].mxu0 %v108
  %v376 = vpop.f32.mrb[0].mxu0
  %v377 = vadd.f32 %v91, %v376
  %v378 = vpop.f32.mrb[0].mxu0
  %v379 = vadd.f32 %v95, %v378
  %380 = vmatprep.mubr.f32.mxu0 0.0
  %381 = vmatmul.mubr.f32.gmra.mrb[0].mxu0 %v111
  %v382 = vpop.f32.mrb[0].mxu0
  %v383 = vadd.f32 %v91, %v382
  %v384 = vpop.f32.mrb[0].mxu0
  %v385 = vadd.f32 %v95, %v384
  %386 = vmatprep.mubr.f32.mxu0 0.0
  %387 = vmatmul.mubr.f32.gmra.mrb[0].mxu0 %v114
  %v388 = vpop.f32.mrb[0].mxu0
  %v389 = vadd.f32 %v91, %v388
  %v390 = vpop.f32.mrb[0].mxu0
  %v391 = vadd.f32 %v95, %v390
  %392 = vmatprep.mubr.f32.mxu0 0.0
  %393 = vmatmul.mubr.f32.gmra.mrb[0].mxu0 %v117
  %v394 = vpop.f32.mrb[0].mxu0
  %v395 = vadd.f32 %v91, %v394
  %v396 = vpop.f32.mrb[0].mxu0
  %v397 = vadd.f32 %v95, %v396
  %398 = vmatprep.mubr.f32.mxu0 0.0
  %399 = vmatmul.mubr.f32.gmra.mrb[0].mxu0 %v120
  %v400 = vpop.f32.mrb[0].mxu0
  %v401 = vadd.f32 %v91, %v400
  %v402 = vpop.f32.mrb[0].mxu0
  %v403 = vadd.f32 %v95, %v402
  %404 = vmatprep.mubr.f32.mxu0 0.0
  %405 = vmatmul.mubr.f32.gmra.mrb[0].mxu0 %v123
  %v406 = vpop.f32.mrb[0].mxu0
  %v407 = vadd.f32 %v91, %v406
  %v408 = vpop.f32.mrb[0].mxu0
  %v409 = vadd.f32 %v95, %v408
  %410 = vmatprep.mubr.f32.mxu0 0.0
  %411 = vmatmul.mubr.f32.gmra.mrb[0].mxu0 %v126
  %v412 = vpop.f32.mrb[0].mxu0
  %v413 = vadd.f32 %v91, %v412
  %v414 = vpop.f32.mrb[0].mxu0
  %v415 = vadd.f32 %v95, %v414
  %416 = vmatprep.mubr.f32.mxu0 0.0
  %417 = vmatmul.mubr.f32.gmra.mrb[0].mxu0 %v129
  %v418 = vpop.f32.mrb[0].mxu0
  %v419 = vadd.f32 %v91, %v418
  %v420 = vpop.f32.mrb[0].mxu0
  %v421 = vadd.f32 %v95, %v420
  %422 = vmatprep.mubr.f32.mxu0 0.0
  %423 = vmatmul.mubr.f32.gmra.mrb[0].mxu0 %v132
  %v424 = vpop.f32.mrb[0].mxu0
  %v425 = vadd.f32 %v91, %v424
  %v426 = vpop.f32.mrb[0].mxu0
  %v427 = vadd.f32 %v95, %v426
  %428 = vmatprep.mubr.f32.mxu0 0.0
  %429 = vmatmul.mubr.f32.gmra.mrb[0].mxu0 %v135
  %v430 = vpop.f32.mrb[0].mxu0
  %v431 = vadd.f32 %v91, %v430
  %v432 = vpop.f32.mrb[0].mxu0
  %v433 = vadd.f32 %v95, %v432
  %434 = vmatprep.mubr.f32.mxu0 0.0
  %435 = vmatmul.mubr.f32.gmra.mrb[0].mxu0 %v138
  %v436 = vpop.f32.mrb[0].mxu0
  %v437 = vadd.f32 %v91, %v436
  %v438 = vpop.f32.mrb[0].mxu0
  %v439 = vadd.f32 %v95, %v438
  %440 = vmatprep.mubr.f32.mxu0 0.0
  %441 = vmatmul.mubr.f32.gmra.mrb[0].mxu0 %v141
  %v442 = vpop.f32.mrb[0].mxu0
  %v443 = vadd.f32 %v91, %v442
  %v444 = vpop.f32.mrb[0].mxu0
  %v445 = vadd.f32 %v95, %v444
  %446 = vmatprep.mubr.f32.mxu0 0.0
  %447 = vmatmul.mubr.f32.gmra.mrb[0].mxu0 %v144
  %v448 = vpop.f32.mrb[0].mxu0
  %v449 = vadd.f32 %v91, %v448
  %v450 = vpop.f32.mrb[0].mxu0
  %v451 = vadd.f32 %v95, %v450
  %452 = vmatprep.mubr.f32.mxu0 0.0
  %453 = vmatmul.mubr.f32.gmra.mrb[0].mxu0 %v147
  %v454 = vpop.f32.mrb[0].mxu0
  %v455 = vadd.f32 %v91, %v454
  %v456 = vpop.f32.mrb[0].mxu0
  %v457 = vadd.f32 %v95, %v456
  %458 = vmatprep.mubr.f32.mxu0 0.0
  %459 = vmatmul.mubr.f32.gmra.mrb[0].mxu0 %v150
  %v460 = vpop.f32.mrb[0].mxu0
  %v461 = vadd.f32 %v91, %v460
  %v462 = vpop.f32.mrb[0].mxu0
  %v463 = vadd.f32 %v95, %v462
  %464 = vmatprep.mubr.f32.mxu0 0.0
  %465 = vmatmul.mubr.f32.gmra.mrb[0].mxu0 %v153
  %v466 = vpop.f32.mrb[0].mxu0
  %v467 = vadd.f32 %v91, %v466
  %v468 = vpop.f32.mrb[0].mxu0
  %v469 = vadd.f32 %v95, %v468
  %470 = vmatprep.mubr.f32.mxu0 0.0
  %471 = vmatmul.mubr.f32.gmra.mrb[0].mxu0 %v156
  %v472 = vpop.f32.mrb[0].mxu0
  %v473 = vadd.f32 %v91, %v472
  %v474 = vpop.f32.mrb[0].mxu0
  %v475 = vadd.f32 %v95, %v474
  %476 = vmatprep.mubr.f32.mxu0 0.0
  %477 = vmatmul.mubr.f32.gmra.mrb[0].mxu0 %v159
  %v478 = vpop.f32.mrb[0].mxu0
  %v479 = vadd.f32 %v91, %v478
  %v480 = vpop.f32.mrb[0].mxu0
  %v481 = vadd.f32 %v95, %v480
  %482 = vmatprep.mubr.f32.mxu0 0.0
  %483 = vmatmul.mubr.f32.gmra.mrb[0].mxu0 %v162
  %v484 = vpop.f32.mrb[0].mxu0
  %v485 = vadd.f32 %v91, %v484
  %v486 = vpop.f32.mrb[0].mxu0
  %v487 = vadd.f32 %v95, %v486
  %488 = vmatprep.mubr.f32.mxu0 0.0
  %489 = vmatmul.mubr.f32.gmra.mrb[0].mxu0 %v165
  %v490 = vpop.f32.mrb[0].mxu0
  %v491 = vadd.f32 %v91, %v490
  %v492 = vpop.f32.mrb[0].mxu0
  %v493 = vadd.f32 %v95, %v492
  %494 = vmatprep.mubr.f32.mxu0 0.0
  %495 = vmatmul.mubr.f32.gmra.mrb[0].mxu0 %v168
  %v496 = vpop.f32.mrb[0].mxu0
  %v497 = vadd.f32 %v91, %v496
  %v498 = vpop.f32.mrb[0].mxu0
  %v499 = vadd.f32 %v95, %v498
  %500 = vmatprep.mubr.f32.mxu0 0.0
  %501 = vmatmul.mubr.f32.gmra.mrb[0].mxu0 %v171
  %v502 = vpop.f32.mrb[0].mxu0
  %v503 = vadd.f32 %v91, %v502
  %v504 = vpop.f32.mrb[0].mxu0
  %v505 = vadd.f32 %v95, %v504
  %506 = vmatprep.mubr.f32.mxu0 0.0
  %507 = vmatmul.mubr.f32.gmra.mrb[0].mxu0 %v174
  %v508 = vpop.f32.mrb[0].mxu0
  %v509 = vadd.f32 %v91, %v508
  %v510 = vpop.f32.mrb[0].mxu0
  %v511 = vadd.f32 %v95, %v510
  %512 = vmatprep.mubr.f32.mxu0 0.0
  %513 = vmatmul.mubr.f32.gmra.mrb[0].mxu0 %v177
  %v514 = vpop.f32.mrb[0].mxu0
  %v515 = vadd.f32 %v91, %v514
  %v516 = vpop.f32.mrb[0].mxu0
  %v517 = vadd.f32 %v95, %v516
  %518 = vmatprep.mubr.f32.mxu0 0.0
  %519 = vmatmul.mubr.f32.gmra.mrb[0].mxu0 %v180
  %v520 = vpop.f32.mrb[0].mxu0
  %v521 = vadd.f32 %v91, %v520
  %v522 = vpop.f32.mrb[0].mxu0
  %v523 = vadd.f32 %v95, %v522
  %524 = vmatprep.mubr.f32.mxu0 0.0
  %525 = vmatmul.mubr.f32.gmra.mrb[0].mxu0 %v183
  %v526 = vpop.f32.mrb[0].mxu0
  %v527 = vadd.f32 %v91, %v526
  %v528 = vpop.f32.mrb[0].mxu0
  %v529 = vadd.f32 %v95, %v528
  %530 = vmatprep.mubr.f32.mxu0 0.0
  %531 = vmatmul.mubr.f32.gmra.mrb[0].mxu0 %v186
  %v532 = vpop.f32.mrb[0].mxu0
  %v533 = vadd.f32 %v91, %v532
  %v534 = vpop.f32.mrb[0].mxu0
  %v535 = vadd.f32 %v95, %v534
  %536 = vmatprep.mubr.f32.mxu0 0.0
  %537 = vmatmul.mubr.f32.gmra.mrb[0].mxu0 %v189
  %v538 = vpop.f32.mrb[0].mxu0
  %v539 = vadd.f32 %v91, %v538
  %v540 = vpop.f32.mrb[0].mxu0
  %v541 = vadd.f32 %v95, %v540
  %542 = vmatprep.mubr.f32.mxu0 0.0
  %543 = vmatmul.mubr.f32.gmra.mrb[0].mxu0 %v192
  %v544 = vpop.f32.mrb[0].mxu0
  %v545 = vadd.f32 %v91, %v544
  %v546 = vpop.f32.mrb[0].mxu0
  %v547 = vadd.f32 %v95, %v546
  %548 = vmatprep.mubr.f32.mxu0 0.0
  %549 = vmatmul.mubr.f32.gmra.mrb[0].mxu0 %v195
  %v550 = vpop.f32.mrb[0].mxu0
  %v551 = vadd.f32 %v91, %v550
  %v552 = vpop.f32.mrb[0].mxu0
  %v553 = vadd.f32 %v95, %v552
  %554 = vmatprep.mubr.f32.mxu0 0.0
  %555 = vmatmul.mubr.f32.gmra.mrb[0].mxu0 %v198
  %v556 = vpop.f32.mrb[0].mxu0
  %v557 = vadd.f32 %v91, %v556
  %v558 = vpop.f32.mrb[0].mxu0
  %v559 = vadd.f32 %v95, %v558
  %560 = vmatprep.mubr.f32.mxu0 0.0
  %561 = vmatmul.mubr.f32.gmra.mrb[0].mxu0 %v201
  %v562 = vpop.f32.mrb[0].mxu0
  %v563 = vadd.f32 %v91, %v562
  %v564 = vpop.f32.mrb[0].mxu0
  %v565 = vadd.f32 %v95, %v564
  %566 = vmatprep.mubr.f32.mxu0 0.0
  %567 = vmatmul.mubr.f32.gmra.mrb[0].mxu0 %v204
  %v568 = vpop.f32.mrb[0].mxu0
  %v569 = vadd.f32 %v91, %v568
  %v570 = vpop.f32.mrb[0].mxu0
  %v571 = vadd.f32 %v95, %v570
  %572 = vmatprep.mubr.f32.mxu0 0.0
  %573 = vmatmul.mubr.f32.gmra.mrb[0].mxu0 %v207
  %v574 = vpop.f32.mrb[0].mxu0
  %v575 = vadd.f32 %v91, %v574
  %v576 = vpop.f32.mrb[0].mxu0
  %v577 = vadd.f32 %v95, %v576
  %578 = vmatprep.mubr.f32.mxu0 0.0
  %579 = vmatmul.mubr.f32.gmra.mrb[0].mxu0 %v210
  %v580 = vpop.f32.mrb[0].mxu0
  %v581 = vadd.f32 %v91, %v580
  %v582 = vpop.f32.mrb[0].mxu0
  %v583 = vadd.f32 %v95, %v582
  %584 = vmatprep.mubr.f32.mxu0 0.0
  %585 = vmatmul.mubr.f32.gmra.mrb[0].mxu0 %v213
  %v586 = vpop.f32.mrb[0].mxu0
  %v587 = vadd.f32 %v91, %v586
  %v588 = vpop.f32.mrb[0].mxu0
  %v589 = vadd.f32 %v95, %v588
  %590 = vmatprep.mubr.f32.mxu0 0.0
  %591 = vmatmul.mubr.f32.gmra.mrb[0].mxu0 %v216
  %v592 = vpop.f32.mrb[0].mxu0
  %v593 = vadd.f32 %v91, %v592
  %v594 = vpop.f32.mrb[0].mxu0
  %v595 = vadd.f32 %v95, %v594
  %596 = vmatprep.mubr.f32.mxu0 0.0
  %597 = vmatmul.mubr.f32.gmra.mrb[0].mxu0 %v219
  %v598 = vpop.f32.mrb[0].mxu0
  %v599 = vadd.f32 %v91, %v598
  %v600 = vpop.f32.mrb[0].mxu0
  %v601 = vadd.f32 %v95, %v600
  %602 = vmatprep.mubr.f32.mxu0 0.0
  %603 = vmatmul.mubr.f32.gmra.mrb[0].mxu0 %v222
  %v604 = vpop.f32.mrb[0].mxu0
  %v605 = vadd.f32 %v91, %v604
  %v606 = vpop.f32.mrb[0].mxu0
  %v607 = vadd.f32 %v95, %v606
  %608 = vmatprep.mubr.f32.mxu0 0.0
  %609 = vmatmul.mubr.f32.gmra.mrb[0].mxu0 %v225
  %v610 = vpop.f32.mrb[0].mxu0
  %v611 = vadd.f32 %v91, %v610
  %v612 = vpop.f32.mrb[0].mxu0
  %v613 = vadd.f32 %v95, %v612
  %614 = vmatprep.mubr.f32.mxu0 0.0
  %615 = vmatmul.mubr.f32.gmra.mrb[0].mxu0 %v228
  %v616 = vpop.f32.mrb[0].mxu0
  %v617 = vadd.f32 %v91, %v616
  %v618 = vpop.f32.mrb[0].mxu0
  %v619 = vadd.f32 %v95, %v618
  %620 = vmatprep.mubr.f32.mxu0 0.0
  %621 = vmatmul.mubr.f32.gmra.mrb[0].mxu0 %v231
  %v622 = vpop.f32.mrb[0].mxu0
  %v623 = vadd.f32 %v91, %v622
  %v624 = vpop.f32.mrb[0].mxu0
  %v625 = vadd.f32 %v95, %v624
  %626 = vmatprep.mubr.f32.mxu0 0.0
  %627 = vmatmul.mubr.f32.gmra.mrb[0].mxu0 %v234
  %v628 = vpop.f32.mrb[0].mxu0
  %v629 = vadd.f32 %v91, %v628
  %v630 = vpop.f32.mrb[0].mxu0
  %v631 = vadd.f32 %v95, %v630
  %632 = vmatprep.mubr.f32.mxu0 0.0
  %633 = vmatmul.mubr.f32.gmra.mrb[0].mxu0 %v237
  %v634 = vpop.f32.mrb[0].mxu0
  %v635 = vadd.f32 %v91, %v634
  %v636 = vpop.f32.mrb[0].mxu0
  %v637 = vadd.f32 %v95, %v636
  %638 = vmatprep.mubr.f32.mxu0 0.0
  %639 = vmatmul.mubr.f32.gmra.mrb[0].mxu0 %v240
  %v640 = vpop.f32.mrb[0].mxu0
  %v641 = vadd.f32 %v91, %v640
  %v642 = vpop.f32.mrb[0].mxu0
  %v643 = vadd.f32 %v95, %v642
  %644 = vmatprep.mubr.f32.mxu0 0.0
  %645 = vmatmul.mubr.f32.gmra.mrb[0].mxu0 %v243
  %v646 = vpop.f32.mrb[0].mxu0
  %v647 = vadd.f32 %v91, %v646
  %v648 = vpop.f32.mrb[0].mxu0
  %v649 = vadd.f32 %v95, %v648
  %650 = vmatprep.mubr.f32.mxu0 0.0
  %651 = vmatmul.mubr.f32.gmra.mrb[0].mxu0 %v246
  %v652 = vpop.f32.mrb[0].mxu0
  %v653 = vadd.f32 %v91, %v652
  %v654 = vpop.f32.mrb[0].mxu0
  %v655 = vadd.f32 %v95, %v654
  %656 = vmatprep.mubr.f32.mxu0 0.0
  %657 = vmatmul.mubr.f32.gmra.mrb[0].mxu0 %v249
  %v658 = vpop.f32.mrb[0].mxu0
  %v659 = vadd.f32 %v91, %v658
  %v660 = vpop.f32.mrb[0].mxu0
  %v661 = vadd.f32 %v95, %v660
  %662 = vmatprep.mubr.f32.mxu0 0.0
  %663 = vmatmul.mubr.f32.gmra.mrb[0].mxu0 %v252
  %v664 = vpop.f32.mrb[0].mxu0
  %v665 = vadd.f32 %v91, %v664
  %v666 = vpop.f32.mrb[0].mxu0
  %v667 = vadd.f32 %v95, %v666
  %668 = vmatprep.mubr.f32.mxu0 0.0
  %669 = vmatmul.mubr.f32.gmra.mrb[0].mxu0 %v255
  %v670 = vpop.f32.mrb[0].mxu0
  %v671 = vadd.f32 %v91, %v670
  %v672 = vpop.f32.mrb[0].mxu0
  %v673 = vadd.f32 %v95, %v672
  %674 = vmatprep.mubr.f32.mxu0 0.0
  %675 = vmatmul.mubr.f32.gmra.mrb[0].mxu0 %v258
  %v676 = vpop.f32.mrb[0].mxu0
  %v677 = vadd.f32 %v91, %v676
  %v678 = vpop.f32.mrb[0].mxu0
  %v679 = vadd.f32 %v95, %v678
  %680 = vmatprep.mubr.f32.mxu0 0.0
  %681 = vmatmul.mubr.f32.gmra.mrb[0].mxu0 %v261
  %v682 = vpop.f32.mrb[0].mxu0
  %v683 = vadd.f32 %v91, %v682
  %v684 = vpop.f32.mrb[0].mxu0
  %v685 = vadd.f32 %v95, %v684
  %686 = vmatprep.mubr.f32.mxu0 0.0
  %687 = vmatmul.mubr.f32.gmra.mrb[0].mxu0 %v264
  %v688 = vpop.f32.mrb[0].mxu0
  %v689 = vadd.f32 %v91, %v688
  %v690 = vpop.f32.mrb[0].mxu0
  %v691 = vadd.f32 %v95, %v690
  %692 = vmatprep.mubr.f32.mxu0 0.0
  %693 = vmatmul.mubr.f32.gmra.mrb[0].mxu0 %v267
  %v694 = vpop.f32.mrb[0].mxu0
  %v695 = vadd.f32 %v91, %v694
  %v696 = vpop.f32.mrb[0].mxu0
  %v697 = vadd.f32 %v95, %v696
  %698 = vmatprep.mubr.f32.mxu0 0.0
  %699 = vmatmul.mubr.f32.gmra.mrb[0].mxu0 %v270
  %v700 = vpop.f32.mrb[0].mxu0
  %v701 = vadd.f32 %v91, %v700
  %v702 = vpop.f32.mrb[0].mxu0
  %v703 = vadd.f32 %v95, %v702
  %704 = vmatprep.mubr.f32.mxu0 0.0
  %705 = vmatmul.mubr.f32.gmra.mrb[0].mxu0 %v273
  %v706 = vpop.f32.mrb[0].mxu0
  %v707 = vadd.f32 %v91, %v706
  %v708 = vpop.f32.mrb[0].mxu0
  %v709 = vadd.f32 %v95, %v708
  %710 = vmatprep.mubr.f32.mxu0 0.0
  %711 = vmatmul.mubr.f32.gmra.mrb[0].mxu0 %v276
  %v712 = vpop.f32.mrb[0].mxu0
  %v713 = vadd.f32 %v91, %v712
  %v714 = vpop.f32.mrb[0].mxu0
  %v715 = vadd.f32 %v95, %v714
  %716 = vmatprep.mubr.f32.mxu0 0.0
  %717 = vmatmul.mubr.f32.gmra.mrb[0].mxu0 %v279
  %v718 = vpop.f32.mrb[0].mxu0
  %v719 = vadd.f32 %v91, %v718
  %v720 = vpop.f32.mrb[0].mxu0
  %v721 = vadd.f32 %v95, %v720
  %722 = vmatprep.mubr.f32.mxu0 0.0
  %723 = vmatmul.mubr.f32.gmra.mrb[0].mxu0 %v282
  %v724 = vpop.f32.mrb[0].mxu0
  %v725 = vadd.f32 %v91, %v724
  %v726 = vpop.f32.mrb[0].mxu0
  %v727 = vadd.f32 %v95, %v726
  %728 = vmatprep.mubr.f32.mxu0 0.0
  %729 = vmatmul.mubr.f32.gmra.mrb[0].mxu0 %v285
  %v730 = vpop.f32.mrb[0].mxu0
  %v731 = vadd.f32 %v91, %v730
  %v732 = vpop.f32.mrb[0].mxu0
  %v733 = vadd.f32 %v95, %v732
  %734 = vmatprep.mubr.f32.mxu0 0.0
  %735 = vmatmul.mubr.f32.gmra.mrb[0].mxu0 %v288
  %v736 = vpop.f32.mrb[0].mxu0
  %v737 = vadd.f32 %v91, %v736
  %v738 = vpop.f32.mrb[0].mxu0
  %v739 = vadd.f32 %v95, %v738
  %740 = vmatprep.mubr.f32.mxu0 0.0
  %741 = vmatmul.mubr.f32.gmra.mrb[0].mxu0 %v291
  %v742 = vpop.f32.mrb[0].mxu0
  %v743 = vadd.f32 %v91, %v742
  %v744 = vpop.f32.mrb[0].mxu0
  %v745 = vadd.f32 %v95, %v744
  %746 = vdwg.mxu0
  %v747 = vmax.f32 %v365, 0.0
  %v748 = vmax.f32 %v367, 0.0
  %v749 = vmax.f32 %v371, 0.0
  %v750 = vmax.f32 %v373, 0.0
  %v751 = vmax.f32 %v377, 0.0
  %v752 = vmax.f32 %v379, 0.0
  %v753 = vmax.f32 %v383, 0.0
  %v754 = vmax.f32 %v385, 0.0
  %v755 = vmax.f32 %v389, 0.0
  %v756 = vmax.f32 %v391, 0.0
  %v757 = vmax.f32 %v395, 0.0
  %v758 = vmax.f32 %v397, 0.0
  %v759 = vmax.f32 %v401, 0.0
  %v760 = vmax.f32 %v403, 0.0
  %v761 = vmax.f32 %v407, 0.0
  %v762 = vmax.f32 %v409, 0.0
  %v763 = vmax.f32 %v413, 0.0
  %v764 = vmax.f32 %v415, 0.0
  %v765 = vmax.f32 %v419, 0.0
  %v766 = vmax.f32 %v421, 0.0
  %v767 = vmax.f32 %v425, 0.0
  %v768 = vmax.f32 %v427, 0.0
  %v769 = vmax.f32 %v431, 0.0
  %v770 = vmax.f32 %v433, 0.0
  %v771 = vmax.f32 %v437, 0.0
  %v772 = vmax.f32 %v439, 0.0
  %v773 = vmax.f32 %v443, 0.0
  %v774 = vmax.f32 %v445, 0.0
  %v775 = vmax.f32 %v449, 0.0
  %v776 = vmax.f32 %v451, 0.0
  %v777 = vmax.f32 %v455, 0.0
  %v778 = vmax.f32 %v457, 0.0
  %v779 = vmax.f32 %v461, 0.0
  %v780 = vmax.f32 %v463, 0.0
  %v781 = vmax.f32 %v467, 0.0
  %v782 = vmax.f32 %v469, 0.0
  %v783 = vmax.f32 %v473, 0.0
  %v784 = vmax.f32 %v475, 0.0
  %v785 = vmax.f32 %v479, 0.0
  %v786 = vmax.f32 %v481, 0.0
  %v787 = vmax.f32 %v485, 0.0
  %v788 = vmax.f32 %v487, 0.0
  %v789 = vmax.f32 %v491, 0.0
  %v790 = vmax.f32 %v493, 0.0
  %v791 = vmax.f32 %v497, 0.0
  %v792 = vmax.f32 %v499, 0.0
  %v793 = vmax.f32 %v503, 0.0
  %v794 = vmax.f32 %v505, 0.0
  %v795 = vmax.f32 %v509, 0.0
  %v796 = vmax.f32 %v511, 0.0
  %v797 = vmax.f32 %v515, 0.0
  %v798 = vmax.f32 %v517, 0.0
  %v799 = vmax.f32 %v521, 0.0
  %v800 = vmax.f32 %v523, 0.0
  %v801 = vmax.f32 %v527, 0.0
  %v802 = vmax.f32 %v529, 0.0
  %v803 = vmax.f32 %v533, 0.0
  %v804 = vmax.f32 %v535, 0.0
  %v805 = vmax.f32 %v539, 0.0
  %v806 = vmax.f32 %v541, 0.0
  %v807 = vmax.f32 %v545, 0.0
  %v808 = vmax.f32 %v547, 0.0
  %v809 = vmax.f32 %v551, 0.0
  %v810 = vmax.f32 %v553, 0.0
  %v811 = vmax.f32 %v557, 0.0
  %v812 = vmax.f32 %v559, 0.0
  %v813 = vmax.f32 %v563, 0.0
  %v814 = vmax.f32 %v565, 0.0
  %v815 = vmax.f32 %v569, 0.0
  %v816 = vmax.f32 %v571, 0.0
  %v817 = vmax.f32 %v575, 0.0
  %v818 = vmax.f32 %v577, 0.0
  %v819 = vmax.f32 %v581, 0.0
  %v820 = vmax.f32 %v583, 0.0
  %v821 = vmax.f32 %v587, 0.0
  %v822 = vmax.f32 %v589, 0.0
  %v823 = vmax.f32 %v593, 0.0
  %v824 = vmax.f32 %v595, 0.0
  %v825 = vmax.f32 %v599, 0.0
  %v826 = vmax.f32 %v601, 0.0
  %v827 = vmax.f32 %v605, 0.0
  %v828 = vmax.f32 %v607, 0.0
  %v829 = vmax.f32 %v611, 0.0
  %v830 = vmax.f32 %v613, 0.0
  %v831 = vmax.f32 %v617, 0.0
  %v832 = vmax.f32 %v619, 0.0
  %v833 = vmax.f32 %v623, 0.0
  %v834 = vmax.f32 %v625, 0.0
  %v835 = vmax.f32 %v629, 0.0
  %v836 = vmax.f32 %v631, 0.0
  %v837 = vmax.f32 %v635, 0.0
  %v838 = vmax.f32 %v637, 0.0
  %v839 = vmax.f32 %v641, 0.0
  %v840 = vmax.f32 %v643, 0.0
  %v841 = vmax.f32 %v647, 0.0
  %v842 = vmax.f32 %v649, 0.0
  %v843 = vmax.f32 %v653, 0.0
  %v844 = vmax.f32 %v655, 0.0
  %v845 = vmax.f32 %v659, 0.0
  %v846 = vmax.f32 %v661, 0.0
  %v847 = vmax.f32 %v665, 0.0
  %v848 = vmax.f32 %v667, 0.0
  %v849 = vmax.f32 %v671, 0.0
  %v850 = vmax.f32 %v673, 0.0
  %v851 = vmax.f32 %v677, 0.0
  %v852 = vmax.f32 %v679, 0.0
  %v853 = vmax.f32 %v683, 0.0
  %v854 = vmax.f32 %v685, 0.0
  %v855 = vmax.f32 %v689, 0.0
  %v856 = vmax.f32 %v691, 0.0
  %v857 = vmax.f32 %v695, 0.0
  %v858 = vmax.f32 %v697, 0.0
  %v859 = vmax.f32 %v701, 0.0
  %v860 = vmax.f32 %v703, 0.0
  %v861 = vmax.f32 %v707, 0.0
  %v862 = vmax.f32 %v709, 0.0
  %v863 = vmax.f32 %v713, 0.0
  %v864 = vmax.f32 %v715, 0.0
  %v865 = vmax.f32 %v719, 0.0
  %v866 = vmax.f32 %v721, 0.0
  %v867 = vmax.f32 %v725, 0.0
  %v868 = vmax.f32 %v727, 0.0
  %v869 = vmax.f32 %v731, 0.0
  %v870 = vmax.f32 %v733, 0.0
  %v871 = vmax.f32 %v737, 0.0
  %v872 = vmax.f32 %v739, 0.0
  %v873 = vmax.f32 %v743, 0.0
  %v874 = vmax.f32 %v745, 0.0
  %v875 = vpack.c.bf16 %v749, %v747
  %v876 = vpack.c.bf16 %v750, %v748
  %v877 = vpack.c.bf16 %v753, %v751
  %v878 = vpack.c.bf16 %v754, %v752
  %v879 = vpack.c.bf16 %v757, %v755
  %v880 = vpack.c.bf16 %v758, %v756
  %v881 = vpack.c.bf16 %v761, %v759
  %v882 = vpack.c.bf16 %v762, %v760
  %v883 = vpack.c.bf16 %v765, %v763
  %v884 = vpack.c.bf16 %v766, %v764
  %v885 = vpack.c.bf16 %v769, %v767
  %v886 = vpack.c.bf16 %v770, %v768
  %v887 = vpack.c.bf16 %v773, %v771
  %v888 = vpack.c.bf16 %v774, %v772
  %v889 = vpack.c.bf16 %v777, %v775
  %v890 = vpack.c.bf16 %v778, %v776
  %v891 = vpack.c.bf16 %v781, %v779
  %v892 = vpack.c.bf16 %v782, %v780
  %v893 = vpack.c.bf16 %v785, %v783
  %v894 = vpack.c.bf16 %v786, %v784
  %v895 = vpack.c.bf16 %v789, %v787
  %v896 = vpack.c.bf16 %v790, %v788
  %v897 = vpack.c.bf16 %v793, %v791
  %v898 = vpack.c.bf16 %v794, %v792
  %v899 = vpack.c.bf16 %v797, %v795
  %v900 = vpack.c.bf16 %v798, %v796
  %v901 = vpack.c.bf16 %v801, %v799
  %v902 = vpack.c.bf16 %v802, %v800
  %v903 = vpack.c.bf16 %v805, %v803
  %v904 = vpack.c.bf16 %v806, %v804
  %v905 = vpack.c.bf16 %v809, %v807
  %v906 = vpack.c.bf16 %v810, %v808
  %v907 = vpack.c.bf16 %v813, %v811
  %v908 = vpack.c.bf16 %v814, %v812
  %v909 = vpack.c.bf16 %v817, %v815
  %v910 = vpack.c.bf16 %v818, %v816
  %v911 = vpack.c.bf16 %v821, %v819
  %v912 = vpack.c.bf16 %v822, %v820
  %v913 = vpack.c.bf16 %v825, %v823
  %v914 = vpack.c.bf16 %v826, %v824
  %v915 = vpack.c.bf16 %v829, %v827
  %v916 = vpack.c.bf16 %v830, %v828
  %v917 = vpack.c.bf16 %v833, %v831
  %v918 = vpack.c.bf16 %v834, %v832
  %v919 = vpack.c.bf16 %v837, %v835
  %v920 = vpack.c.bf16 %v838, %v836
  %v921 = vpack.c.bf16 %v841, %v839
  %v922 = vpack.c.bf16 %v842, %v840
  %v923 = vpack.c.bf16 %v845, %v843
  %v924 = vpack.c.bf16 %v846, %v844
  %v925 = vpack.c.bf16 %v849, %v847
  %v926 = vpack.c.bf16 %v850, %v848
  %v927 = vpack.c.bf16 %v853, %v851
  %v928 = vpack.c.bf16 %v854, %v852
  %v929 = vpack.c.bf16 %v857, %v855
  %v930 = vpack.c.bf16 %v858, %v856
  %v931 = vpack.c.bf16 %v861, %v859
  %v932 = vpack.c.bf16 %v862, %v860
  %v933 = vpack.c.bf16 %v865, %v863
  %v934 = vpack.c.bf16 %v866, %v864
  %v935 = vpack.c.bf16 %v869, %v867
  %v936 = vpack.c.bf16 %v870, %v868
  %v937 = vpack.c.bf16 %v873, %v871
  %v938 = vpack.c.bf16 %v874, %v872
  %v939 = vld [vmem:[%s3] sm:$0xf]
  %v940 = vld [vmem:[%s3 + $0x4] sm:$0xf]
  %v941 = vld [vmem:[%s3 + $0x8] sm:$0xf]
  %v942 = vld [vmem:[%s3 + $0xc] sm:$0xf]
  %v943 = vld [vmem:[%s3 + $0x10] sm:$0xf]
  %v944 = vld [vmem:[%s3 + $0x14] sm:$0xf]
  %v945 = vld [vmem:[%s3 + $0x18] sm:$0xf]
  %v946 = vld [vmem:[%s3 + $0x1c] sm:$0xf]
  %v947 = vld [vmem:[%s3 + $0x20] sm:$0xf]
  %v948 = vld [vmem:[%s3 + $0x24] sm:$0xf]
  %v949 = vld [vmem:[%s3 + $0x28] sm:$0xf]
  %v950 = vld [vmem:[%s3 + $0x2c] sm:$0xf]
  %v951 = vld [vmem:[%s3 + $0x30] sm:$0xf]
  %v952 = vld [vmem:[%s3 + $0x34] sm:$0xf]
  %v953 = vld [vmem:[%s3 + $0x38] sm:$0xf]
  %v954 = vld [vmem:[%s3 + $0x3c] sm:$0xf]
  %v955 = vld [vmem:[%s3 + $0x40] sm:$0xf]
  %v956 = vld [vmem:[%s3 + $0x44] sm:$0xf]
  %v957 = vld [vmem:[%s3 + $0x48] sm:$0xf]
  %v958 = vld [vmem:[%s3 + $0x4c] sm:$0xf]
  %v959 = vld [vmem:[%s3 + $0x50] sm:$0xf]
  %v960 = vld [vmem:[%s3 + $0x54] sm:$0xf]
  %v961 = vld [vmem:[%s3 + $0x58] sm:$0xf]
  %v962 = vld [vmem:[%s3 + $0x5c] sm:$0xf]
  %v963 = vld [vmem:[%s3 + $0x60] sm:$0xf]
  %v964 = vld [vmem:[%s3 + $0x64] sm:$0xf]
  %v965 = vld [vmem:[%s3 + $0x68] sm:$0xf]
  %v966 = vld [vmem:[%s3 + $0x6c] sm:$0xf]
  %v967 = vld [vmem:[%s3 + $0x70] sm:$0xf]
  %v968 = vld [vmem:[%s3 + $0x74] sm:$0xf]
  %v969 = vld [vmem:[%s3 + $0x78] sm:$0xf]
  %v970 = vld [vmem:[%s3 + $0x7c] sm:$0xf]
  %v971 = vld [vmem:[%s4] sm:$0x1]
  %v973 = vlaneseq
  %v974 = vshrl.u32 %v973, 7
  %v975 = vsub.s32 0, %v974
  %v976 = vrot.slane %v971, %v975
  %v1010 = vunpack.c.l.b16 %v939
  %v1011 = vunpack.c.l.b16 %v940
  %v1012 = vunpack.c.l.b16 %v941
  %v1013 = vunpack.c.l.b16 %v942
  %v1014 = vunpack.c.l.b16 %v943
  %v1015 = vunpack.c.l.b16 %v944
  %v1016 = vunpack.c.l.b16 %v945
  %v1017 = vunpack.c.l.b16 %v946
  %v1018 = vunpack.c.l.b16 %v947
  %v1019 = vunpack.c.l.b16 %v948
  %v1020 = vunpack.c.l.b16 %v949
  %v1021 = vunpack.c.l.b16 %v950
  %v1022 = vunpack.c.l.b16 %v951
  %v1023 = vunpack.c.l.b16 %v952
  %v1024 = vunpack.c.l.b16 %v953
  %v1025 = vunpack.c.l.b16 %v954
  %v1026 = vunpack.c.l.b16 %v955
  %v1027 = vunpack.c.l.b16 %v956
  %v1028 = vunpack.c.l.b16 %v957
  %v1029 = vunpack.c.l.b16 %v958
  %v1030 = vunpack.c.l.b16 %v959
  %v1031 = vunpack.c.l.b16 %v960
  %v1032 = vunpack.c.l.b16 %v961
  %v1033 = vunpack.c.l.b16 %v962
  %v1034 = vunpack.c.l.b16 %v963
  %v1035 = vunpack.c.l.b16 %v964
  %v1036 = vunpack.c.l.b16 %v965
  %v1037 = vunpack.c.l.b16 %v966
  %v1038 = vunpack.c.l.b16 %v967
  %v1039 = vunpack.c.l.b16 %v968
  %v1040 = vunpack.c.l.b16 %v969
  %v1041 = vunpack.c.l.b16 %v970
  %v1042 = vpack.c.b16 %v1011, %v1010
  %v1043 = vpack.c.b16 %v1013, %v1012
  %v1044 = vpack.c.b16 %v1015, %v1014
  %v1045 = vpack.c.b16 %v1017, %v1016
  %v1046 = vpack.c.b16 %v1019, %v1018
  %v1047 = vpack.c.b16 %v1021, %v1020
  %v1048 = vpack.c.b16 %v1023, %v1022
  %v1049 = vpack.c.b16 %v1025, %v1024
  %v1050 = vpack.c.b16 %v1027, %v1026
  %v1051 = vpack.c.b16 %v1029, %v1028
  %v1052 = vpack.c.b16 %v1031, %v1030
  %v1053 = vpack.c.b16 %v1033, %v1032
  %v1054 = vpack.c.b16 %v1035, %v1034
  %v1055 = vpack.c.b16 %v1037, %v1036
  %v1056 = vpack.c.b16 %v1039, %v1038
  %v1057 = vpack.c.b16 %v1041, %v1040
  %1074 = vmatprep.subr.bf16.mxu0 0
  %1075 = vmatpush1.bf16.msra.mxu0 %v1042
  %1076 = vmatprep.subr.bf16.mxu0 0
  %1077 = vmatpush1.bf16.msra.mxu0 %v1043
  %1078 = vmatprep.subr.bf16.mxu0 0
  %1079 = vmatpush1.bf16.msra.mxu0 %v1044
  %1080 = vmatprep.subr.bf16.mxu0 0
  %1081 = vmatpush1.bf16.msra.mxu0 %v1045
  %1082 = vmatprep.subr.bf16.mxu0 0
  %1083 = vmatpush1.bf16.msra.mxu0 %v1046
  %1084 = vmatprep.subr.bf16.mxu0 0
  %1085 = vmatpush1.bf16.msra.mxu0 %v1047
  %1086 = vmatprep.subr.bf16.mxu0 0
  %1087 = vmatpush1.bf16.msra.mxu0 %v1048
  %1088 = vmatprep.subr.bf16.mxu0 0
  %1089 = vmatpush1.bf16.msra.mxu0 %v1049
  %1090 = vmatprep.subr.bf16.mxu0 0
  %1091 = vmatpush1.bf16.msra.mxu0 %v1050
  %1092 = vmatprep.subr.bf16.mxu0 0
  %1093 = vmatpush1.bf16.msra.mxu0 %v1051
  %1094 = vmatprep.subr.bf16.mxu0 0
  %1095 = vmatpush1.bf16.msra.mxu0 %v1052
  %1096 = vmatprep.subr.bf16.mxu0 0
  %1097 = vmatpush1.bf16.msra.mxu0 %v1053
  %1098 = vmatprep.subr.bf16.mxu0 0
  %1099 = vmatpush1.bf16.msra.mxu0 %v1054
  %1100 = vmatprep.subr.bf16.mxu0 0
  %1101 = vmatpush1.bf16.msra.mxu0 %v1055
  %1102 = vmatprep.subr.bf16.mxu0 0
  %1103 = vmatpush1.bf16.msra.mxu0 %v1056
  %1104 = vmatprep.subr.bf16.mxu0 0
  %1105 = vmatpush1.bf16.msra.mxu0 %v1057
  %1106 = vmatprep.mubr.bf16.mxu0 %v876
  %1107 = vmatmul.mubr.bf16.gmra.mrb[0].mxu0 %v875
  %v1108 = vpop.f32.mrb[0].mxu0
  %v1109 = vadd.f32 %v976, %v1108
  %v1110 = vpop.f32.mrb[0].mxu0
  %v1111 = vpop.f32.mrb[0].mxu0
  %v1112 = vadd.f32 %v976, %v1111
  %v1113 = vpop.f32.mrb[0].mxu0
  %1114 = vmatprep.mubr.bf16.mxu0 %v878
  %1115 = vmatmul.mubr.bf16.gmra.mrb[0].mxu0 %v877
  %v1116 = vpop.f32.mrb[0].mxu0
  %v1117 = vadd.f32 %v976, %v1116
  %v1118 = vpop.f32.mrb[0].mxu0
  %v1119 = vpop.f32.mrb[0].mxu0
  %v1120 = vadd.f32 %v976, %v1119
  %v1121 = vpop.f32.mrb[0].mxu0
  %1122 = vmatprep.mubr.bf16.mxu0 %v880
  %1123 = vmatmul.mubr.bf16.gmra.mrb[0].mxu0 %v879
  %v1124 = vpop.f32.mrb[0].mxu0
  %v1125 = vadd.f32 %v976, %v1124
  %v1126 = vpop.f32.mrb[0].mxu0
  %v1127 = vpop.f32.mrb[0].mxu0
  %v1128 = vadd.f32 %v976, %v1127
  %v1129 = vpop.f32.mrb[0].mxu0
  %1130 = vmatprep.mubr.bf16.mxu0 %v882
  %1131 = vmatmul.mubr.bf16.gmra.mrb[0].mxu0 %v881
  %v1132 = vpop.f32.mrb[0].mxu0
  %v1133 = vadd.f32 %v976, %v1132
  %v1134 = vpop.f32.mrb[0].mxu0
  %v1135 = vpop.f32.mrb[0].mxu0
  %v1136 = vadd.f32 %v976, %v1135
  %v1137 = vpop.f32.mrb[0].mxu0
  %1138 = vmatprep.mubr.bf16.mxu0 %v884
  %1139 = vmatmul.mubr.bf16.gmra.mrb[0].mxu0 %v883
  %v1140 = vpop.f32.mrb[0].mxu0
  %v1141 = vadd.f32 %v976, %v1140
  %v1142 = vpop.f32.mrb[0].mxu0
  %v1143 = vpop.f32.mrb[0].mxu0
  %v1144 = vadd.f32 %v976, %v1143
  %v1145 = vpop.f32.mrb[0].mxu0
  %1146 = vmatprep.mubr.bf16.mxu0 %v886
  %1147 = vmatmul.mubr.bf16.gmra.mrb[0].mxu0 %v885
  %v1148 = vpop.f32.mrb[0].mxu0
  %v1149 = vadd.f32 %v976, %v1148
  %v1150 = vpop.f32.mrb[0].mxu0
  %v1151 = vpop.f32.mrb[0].mxu0
  %v1152 = vadd.f32 %v976, %v1151
  %v1153 = vpop.f32.mrb[0].mxu0
  %1154 = vmatprep.mubr.bf16.mxu0 %v888
  %1155 = vmatmul.mubr.bf16.gmra.mrb[0].mxu0 %v887
  %v1156 = vpop.f32.mrb[0].mxu0
  %v1157 = vadd.f32 %v976, %v1156
  %v1158 = vpop.f32.mrb[0].mxu0
  %v1159 = vpop.f32.mrb[0].mxu0
  %v1160 = vadd.f32 %v976, %v1159
  %v1161 = vpop.f32.mrb[0].mxu0
  %1162 = vmatprep.mubr.bf16.mxu0 %v890
  %1163 = vmatmul.mubr.bf16.gmra.mrb[0].mxu0 %v889
  %v1164 = vpop.f32.mrb[0].mxu0
  %v1165 = vadd.f32 %v976, %v1164
  %v1166 = vpop.f32.mrb[0].mxu0
  %v1167 = vpop.f32.mrb[0].mxu0
  %v1168 = vadd.f32 %v976, %v1167
  %v1169 = vpop.f32.mrb[0].mxu0
  %1170 = vmatprep.mubr.bf16.mxu0 %v892
  %1171 = vmatmul.mubr.bf16.gmra.mrb[0].mxu0 %v891
  %v1172 = vpop.f32.mrb[0].mxu0
  %v1173 = vadd.f32 %v976, %v1172
  %v1174 = vpop.f32.mrb[0].mxu0
  %v1175 = vpop.f32.mrb[0].mxu0
  %v1176 = vadd.f32 %v976, %v1175
  %v1177 = vpop.f32.mrb[0].mxu0
  %1178 = vmatprep.mubr.bf16.mxu0 %v894
  %1179 = vmatmul.mubr.bf16.gmra.mrb[0].mxu0 %v893
  %v1180 = vpop.f32.mrb[0].mxu0
  %v1181 = vadd.f32 %v976, %v1180
  %v1182 = vpop.f32.mrb[0].mxu0
  %v1183 = vpop.f32.mrb[0].mxu0
  %v1184 = vadd.f32 %v976, %v1183
  %v1185 = vpop.f32.mrb[0].mxu0
  %1186 = vmatprep.mubr.bf16.mxu0 %v896
  %1187 = vmatmul.mubr.bf16.gmra.mrb[0].mxu0 %v895
  %v1188 = vpop.f32.mrb[0].mxu0
  %v1189 = vadd.f32 %v976, %v1188
  %v1190 = vpop.f32.mrb[0].mxu0
  %v1191 = vpop.f32.mrb[0].mxu0
  %v1192 = vadd.f32 %v976, %v1191
  %v1193 = vpop.f32.mrb[0].mxu0
  %1194 = vmatprep.mubr.bf16.mxu0 %v898
  %1195 = vmatmul.mubr.bf16.gmra.mrb[0].mxu0 %v897
  %v1196 = vpop.f32.mrb[0].mxu0
  %v1197 = vadd.f32 %v976, %v1196
  %v1198 = vpop.f32.mrb[0].mxu0
  %v1199 = vpop.f32.mrb[0].mxu0
  %v1200 = vadd.f32 %v976, %v1199
  %v1201 = vpop.f32.mrb[0].mxu0
  %1202 = vmatprep.mubr.bf16.mxu0 %v900
  %1203 = vmatmul.mubr.bf16.gmra.mrb[0].mxu0 %v899
  %v1204 = vpop.f32.mrb[0].mxu0
  %v1205 = vadd.f32 %v976, %v1204
  %v1206 = vpop.f32.mrb[0].mxu0
  %v1207 = vpop.f32.mrb[0].mxu0
  %v1208 = vadd.f32 %v976, %v1207
  %v1209 = vpop.f32.mrb[0].mxu0
  %1210 = vmatprep.mubr.bf16.mxu0 %v902
  %1211 = vmatmul.mubr.bf16.gmra.mrb[0].mxu0 %v901
  %v1212 = vpop.f32.mrb[0].mxu0
  %v1213 = vadd.f32 %v976, %v1212
  %v1214 = vpop.f32.mrb[0].mxu0
  %v1215 = vpop.f32.mrb[0].mxu0
  %v1216 = vadd.f32 %v976, %v1215
  %v1217 = vpop.f32.mrb[0].mxu0
  %1218 = vmatprep.mubr.bf16.mxu0 %v904
  %1219 = vmatmul.mubr.bf16.gmra.mrb[0].mxu0 %v903
  %v1220 = vpop.f32.mrb[0].mxu0
  %v1221 = vadd.f32 %v976, %v1220
  %v1222 = vpop.f32.mrb[0].mxu0
  %v1223 = vpop.f32.mrb[0].mxu0
  %v1224 = vadd.f32 %v976, %v1223
  %v1225 = vpop.f32.mrb[0].mxu0
  %1226 = vmatprep.mubr.bf16.mxu0 %v906
  %1227 = vmatmul.mubr.bf16.gmra.mrb[0].mxu0 %v905
  %v1228 = vpop.f32.mrb[0].mxu0
  %v1229 = vadd.f32 %v976, %v1228
  %v1230 = vpop.f32.mrb[0].mxu0
  %v1231 = vpop.f32.mrb[0].mxu0
  %v1232 = vadd.f32 %v976, %v1231
  %v1233 = vpop.f32.mrb[0].mxu0
  %1234 = vmatprep.mubr.bf16.mxu0 %v908
  %1235 = vmatmul.mubr.bf16.gmra.mrb[0].mxu0 %v907
  %v1236 = vpop.f32.mrb[0].mxu0
  %v1237 = vadd.f32 %v976, %v1236
  %v1238 = vpop.f32.mrb[0].mxu0
  %v1239 = vpop.f32.mrb[0].mxu0
  %v1240 = vadd.f32 %v976, %v1239
  %v1241 = vpop.f32.mrb[0].mxu0
  %1242 = vmatprep.mubr.bf16.mxu0 %v910
  %1243 = vmatmul.mubr.bf16.gmra.mrb[0].mxu0 %v909
  %v1244 = vpop.f32.mrb[0].mxu0
  %v1245 = vadd.f32 %v976, %v1244
  %v1246 = vpop.f32.mrb[0].mxu0
  %v1247 = vpop.f32.mrb[0].mxu0
  %v1248 = vadd.f32 %v976, %v1247
  %v1249 = vpop.f32.mrb[0].mxu0
  %1250 = vmatprep.mubr.bf16.mxu0 %v912
  %1251 = vmatmul.mubr.bf16.gmra.mrb[0].mxu0 %v911
  %v1252 = vpop.f32.mrb[0].mxu0
  %v1253 = vadd.f32 %v976, %v1252
  %v1254 = vpop.f32.mrb[0].mxu0
  %v1255 = vpop.f32.mrb[0].mxu0
  %v1256 = vadd.f32 %v976, %v1255
  %v1257 = vpop.f32.mrb[0].mxu0
  %1258 = vmatprep.mubr.bf16.mxu0 %v914
  %1259 = vmatmul.mubr.bf16.gmra.mrb[0].mxu0 %v913
  %v1260 = vpop.f32.mrb[0].mxu0
  %v1261 = vadd.f32 %v976, %v1260
  %v1262 = vpop.f32.mrb[0].mxu0
  %v1263 = vpop.f32.mrb[0].mxu0
  %v1264 = vadd.f32 %v976, %v1263
  %v1265 = vpop.f32.mrb[0].mxu0
  %1266 = vmatprep.mubr.bf16.mxu0 %v916
  %1267 = vmatmul.mubr.bf16.gmra.mrb[0].mxu0 %v915
  %v1268 = vpop.f32.mrb[0].mxu0
  %v1269 = vadd.f32 %v976, %v1268
  %v1270 = vpop.f32.mrb[0].mxu0
  %v1271 = vpop.f32.mrb[0].mxu0
  %v1272 = vadd.f32 %v976, %v1271
  %v1273 = vpop.f32.mrb[0].mxu0
  %1274 = vmatprep.mubr.bf16.mxu0 %v918
  %1275 = vmatmul.mubr.bf16.gmra.mrb[0].mxu0 %v917
  %v1276 = vpop.f32.mrb[0].mxu0
  %v1277 = vadd.f32 %v976, %v1276
  %v1278 = vpop.f32.mrb[0].mxu0
  %v1279 = vpop.f32.mrb[0].mxu0
  %v1280 = vadd.f32 %v976, %v1279
  %v1281 = vpop.f32.mrb[0].mxu0
  %1282 = vmatprep.mubr.bf16.mxu0 %v920
  %1283 = vmatmul.mubr.bf16.gmra.mrb[0].mxu0 %v919
  %v1284 = vpop.f32.mrb[0].mxu0
  %v1285 = vadd.f32 %v976, %v1284
  %v1286 = vpop.f32.mrb[0].mxu0
  %v1287 = vpop.f32.mrb[0].mxu0
  %v1288 = vadd.f32 %v976, %v1287
  %v1289 = vpop.f32.mrb[0].mxu0
  %1290 = vmatprep.mubr.bf16.mxu0 %v922
  %1291 = vmatmul.mubr.bf16.gmra.mrb[0].mxu0 %v921
  %v1292 = vpop.f32.mrb[0].mxu0
  %v1293 = vadd.f32 %v976, %v1292
  %v1294 = vpop.f32.mrb[0].mxu0
  %v1295 = vpop.f32.mrb[0].mxu0
  %v1296 = vadd.f32 %v976, %v1295
  %v1297 = vpop.f32.mrb[0].mxu0
  %1298 = vmatprep.mubr.bf16.mxu0 %v924
  %1299 = vmatmul.mubr.bf16.gmra.mrb[0].mxu0 %v923
  %v1300 = vpop.f32.mrb[0].mxu0
  %v1301 = vadd.f32 %v976, %v1300
  %v1302 = vpop.f32.mrb[0].mxu0
  %v1303 = vpop.f32.mrb[0].mxu0
  %v1304 = vadd.f32 %v976, %v1303
  %v1305 = vpop.f32.mrb[0].mxu0
  %1306 = vmatprep.mubr.bf16.mxu0 %v926
  %1307 = vmatmul.mubr.bf16.gmra.mrb[0].mxu0 %v925
  %v1308 = vpop.f32.mrb[0].mxu0
  %v1309 = vadd.f32 %v976, %v1308
  %v1310 = vpop.f32.mrb[0].mxu0
  %v1311 = vpop.f32.mrb[0].mxu0
  %v1312 = vadd.f32 %v976, %v1311
  %v1313 = vpop.f32.mrb[0].mxu0
  %1314 = vmatprep.mubr.bf16.mxu0 %v928
  %1315 = vmatmul.mubr.bf16.gmra.mrb[0].mxu0 %v927
  %v1316 = vpop.f32.mrb[0].mxu0
  %v1317 = vadd.f32 %v976, %v1316
  %v1318 = vpop.f32.mrb[0].mxu0
  %v1319 = vpop.f32.mrb[0].mxu0
  %v1320 = vadd.f32 %v976, %v1319
  %v1321 = vpop.f32.mrb[0].mxu0
  %1322 = vmatprep.mubr.bf16.mxu0 %v930
  %1323 = vmatmul.mubr.bf16.gmra.mrb[0].mxu0 %v929
  %v1324 = vpop.f32.mrb[0].mxu0
  %v1325 = vadd.f32 %v976, %v1324
  %v1326 = vpop.f32.mrb[0].mxu0
  %v1327 = vpop.f32.mrb[0].mxu0
  %v1328 = vadd.f32 %v976, %v1327
  %v1329 = vpop.f32.mrb[0].mxu0
  %1330 = vmatprep.mubr.bf16.mxu0 %v932
  %1331 = vmatmul.mubr.bf16.gmra.mrb[0].mxu0 %v931
  %v1332 = vpop.f32.mrb[0].mxu0
  %v1333 = vadd.f32 %v976, %v1332
  %v1334 = vpop.f32.mrb[0].mxu0
  %v1335 = vpop.f32.mrb[0].mxu0
  %v1336 = vadd.f32 %v976, %v1335
  %v1337 = vpop.f32.mrb[0].mxu0
  %1338 = vmatprep.mubr.bf16.mxu0 %v934
  %1339 = vmatmul.mubr.bf16.gmra.mrb[0].mxu0 %v933
  %v1340 = vpop.f32.mrb[0].mxu0
  %v1341 = vadd.f32 %v976, %v1340
  %v1342 = vpop.f32.mrb[0].mxu0
  %v1343 = vpop.f32.mrb[0].mxu0
  %v1344 = vadd.f32 %v976, %v1343
  %v1345 = vpop.f32.mrb[0].mxu0
  %1346 = vmatprep.mubr.bf16.mxu0 %v936
  %1347 = vmatmul.mubr.bf16.gmra.mrb[0].mxu0 %v935
  %v1348 = vpop.f32.mrb[0].mxu0
  %v1349 = vadd.f32 %v976, %v1348
  %v1350 = vpop.f32.mrb[0].mxu0
  %v1351 = vpop.f32.mrb[0].mxu0
  %v1352 = vadd.f32 %v976, %v1351
  %v1353 = vpop.f32.mrb[0].mxu0
  %1354 = vmatprep.mubr.bf16.mxu0 %v938
  %1355 = vmatmul.mubr.bf16.gmra.mrb[0].mxu0 %v937
  %v1356 = vpop.f32.mrb[0].mxu0
  %v1357 = vadd.f32 %v976, %v1356
  %v1358 = vpop.f32.mrb[0].mxu0
  %v1359 = vpop.f32.mrb[0].mxu0
  %v1360 = vadd.f32 %v976, %v1359
  %v1361 = vpop.f32.mrb[0].mxu0
  %1362 = vdwg.mxu0
  %1363 = vst [vmem:[%s5] sm:$0xff] %v1109
  %1364 = vst [vmem:[%s5 + $0x8] sm:$0xff] %v1112
  %1365 = vst [vmem:[%s5 + $0x10] sm:$0xff] %v1117
  %1366 = vst [vmem:[%s5 + $0x18] sm:$0xff] %v1120
  %1367 = vst [vmem:[%s5 + $0x20] sm:$0xff] %v1125
  %1368 = vst [vmem:[%s5 + $0x28] sm:$0xff] %v1128
  %1369 = vst [vmem:[%s5 + $0x30] sm:$0xff] %v1133
  %1370 = vst [vmem:[%s5 + $0x38] sm:$0xff] %v1136
  %1371 = vst [vmem:[%s5 + $0x40] sm:$0xff] %v1141
  %1372 = vst [vmem:[%s5 + $0x48] sm:$0xff] %v1144
  %1373 = vst [vmem:[%s5 + $0x50] sm:$0xff] %v1149
  %1374 = vst [vmem:[%s5 + $0x58] sm:$0xff] %v1152
  %1375 = vst [vmem:[%s5 + $0x60] sm:$0xff] %v1157
  %1376 = vst [vmem:[%s5 + $0x68] sm:$0xff] %v1160
  %1377 = vst [vmem:[%s5 + $0x70] sm:$0xff] %v1165
  %1378 = vst [vmem:[%s5 + $0x78] sm:$0xff] %v1168
  %1379 = vst [vmem:[%s5 + $0x80] sm:$0xff] %v1173
  %1380 = vst [vmem:[%s5 + $0x88] sm:$0xff] %v1176
  %1381 = vst [vmem:[%s5 + $0x90] sm:$0xff] %v1181
  %1382 = vst [vmem:[%s5 + $0x98] sm:$0xff] %v1184
  %1383 = vst [vmem:[%s5 + $0xa0] sm:$0xff] %v1189
  %1384 = vst [vmem:[%s5 + $0xa8] sm:$0xff] %v1192
  %1385 = vst [vmem:[%s5 + $0xb0] sm:$0xff] %v1197
  %1386 = vst [vmem:[%s5 + $0xb8] sm:$0xff] %v1200
  %1387 = vst [vmem:[%s5 + $0xc0] sm:$0xff] %v1205
  %1388 = vst [vmem:[%s5 + $0xc8] sm:$0xff] %v1208
  %1389 = vst [vmem:[%s5 + $0xd0] sm:$0xff] %v1213
  %1390 = vst [vmem:[%s5 + $0xd8] sm:$0xff] %v1216
  %1391 = vst [vmem:[%s5 + $0xe0] sm:$0xff] %v1221
  %1392 = vst [vmem:[%s5 + $0xe8] sm:$0xff] %v1224
  %1393 = vst [vmem:[%s5 + $0xf0] sm:$0xff] %v1229
  %1394 = vst [vmem:[%s5 + $0xf8] sm:$0xff] %v1232
  %1395 = vst [vmem:[%s5 + $0x100] sm:$0xff] %v1237
  %1396 = vst [vmem:[%s5 + $0x108] sm:$0xff] %v1240
  %1397 = vst [vmem:[%s5 + $0x110] sm:$0xff] %v1245
  %1398 = vst [vmem:[%s5 + $0x118] sm:$0xff] %v1248
  %1399 = vst [vmem:[%s5 + $0x120] sm:$0xff] %v1253
  %1400 = vst [vmem:[%s5 + $0x128] sm:$0xff] %v1256
  %1401 = vst [vmem:[%s5 + $0x130] sm:$0xff] %v1261
  %1402 = vst [vmem:[%s5 + $0x138] sm:$0xff] %v1264
  %1403 = vst [vmem:[%s5 + $0x140] sm:$0xff] %v1269
  %1404 = vst [vmem:[%s5 + $0x148] sm:$0xff] %v1272
  %1405 = vst [vmem:[%s5 + $0x150] sm:$0xff] %v1277
  %1406 = vst [vmem:[%s5 + $0x158] sm:$0xff] %v1280
  %1407 = vst [vmem:[%s5 + $0x160] sm:$0xff] %v1285
  %1408 = vst [vmem:[%s5 + $0x168] sm:$0xff] %v1288
  %1409 = vst [vmem:[%s5 + $0x170] sm:$0xff] %v1293
  %1410 = vst [vmem:[%s5 + $0x178] sm:$0xff] %v1296
  %1411 = vst [vmem:[%s5 + $0x180] sm:$0xff] %v1301
  %1412 = vst [vmem:[%s5 + $0x188] sm:$0xff] %v1304
  %1413 = vst [vmem:[%s5 + $0x190] sm:$0xff] %v1309
  %1414 = vst [vmem:[%s5 + $0x198] sm:$0xff] %v1312
  %1415 = vst [vmem:[%s5 + $0x1a0] sm:$0xff] %v1317
  %1416 = vst [vmem:[%s5 + $0x1a8] sm:$0xff] %v1320
  %1417 = vst [vmem:[%s5 + $0x1b0] sm:$0xff] %v1325
  %1418 = vst [vmem:[%s5 + $0x1b8] sm:$0xff] %v1328
  %1419 = vst [vmem:[%s5 + $0x1c0] sm:$0xff] %v1333
  %1420 = vst [vmem:[%s5 + $0x1c8] sm:$0xff] %v1336
  %1421 = vst [vmem:[%s5 + $0x1d0] sm:$0xff] %v1341
  %1422 = vst [vmem:[%s5 + $0x1d8] sm:$0xff] %v1344
  %1423 = vst [vmem:[%s5 + $0x1e0] sm:$0xff] %v1349
  %1424 = vst [vmem:[%s5 + $0x1e8] sm:$0xff] %v1352
  %1425 = vst [vmem:[%s5 + $0x1f0] sm:$0xff] %v1357
  %1426 = vst [vmem:[%s5 + $0x1f8] sm:$0xff] %v1360
  // Predicated region
  $region22: #{dqn_forward.1} parent=0 // pred_check
    _
  $region23: #{dqn_forward.1} parent=0 // pred_check_branch
    %1428 = sbr.rel (0) target = $region25
  $region24: #{dqn_forward.1} parent=0 // pred_region
    _
  $region25: #{dqn_forward.1} parent=0 // pred_fallthru
    _
  // Predicated region
  $region26: #{dqn_forward.1} parent=0 // pred_check
    _
  $region27: #{dqn_forward.1} parent=0 // pred_check_branch
    %1430 = sbr.rel (0) target = $region29
  $region28: #{dqn_forward.1} parent=0 // pred_region
    _
  $region29: #{dqn_forward.1} parent=0 // pred_fallthru
    _

</llo_original>
